<compile_context>
chip_gen: v7x
topology: tpu7x:2x2x1
jax: 0.10.0
libtpu: 0.0.40
codegen_flags: <defaults>
</compile_context>

<pallas_src>
import functools

import jax
import jax.numpy as jnp
from jax import lax
from jax.experimental import pallas as pl
from jax.experimental.pallas import tpu as pltpu


def _infonce_kernel(temp_ref, v_ref, t_ref, loss_ref,
                    m_r_ref, l_r_ref, diag_ref, acc_ref,
                    *, single_tile, use_bf16_col_exp, mxu_bf16_inputs):
    j = pl.program_id(0)
    num_col_tiles = pl.num_programs(0)

    B = v_ref.shape[0]
    D = v_ref.shape[1]
    Tc = t_ref.shape[0]

    # One scalar reciprocal instead of dividing the whole logits tile.
    inv_temp = 1.0 / temp_ref[0]

    @pl.when(j == 0)
    def _init():
        m_r_ref[...] = jnp.full(m_r_ref.shape, -jnp.inf, jnp.float32)
        l_r_ref[...] = jnp.zeros(l_r_ref.shape, jnp.float32)
        acc_ref[0] = 0.0  # running sum of tile-local (lse_c - diag)

    v = v_ref[...]  # [B, D]
    t = t_ref[...]  # [Tc, D]

    if mxu_bf16_inputs and v.dtype == jnp.float32:
        # v5e lever: bf16 MXU inputs, f32 accumulation, f32 softmax math.
        v_mm = v.astype(jnp.bfloat16)
        t_mm = t.astype(jnp.bfloat16)
    else:
        v_mm, t_mm = v, t

    # logits tile [B, Tc] = V . T^T : NT matmul on the MXU, f32 accumulation.
    s = lax.dot_general(
        v_mm, t_mm,
        dimension_numbers=(((1,), (1,)), ((), ())),
        preferred_element_type=jnp.float32,
    ) * inv_temp

    # --- positive-pair (diagonal) logits for this column tile: O(Tc*D) ------
    if single_tile:
        v_rows = v.astype(jnp.float32)                       # [B==Tc, D]
    else:
        row_start = j * Tc
        if Tc % 128 == 0:
            row_start = pl.multiple_of(row_start, 128)
        elif Tc % 8 == 0:
            row_start = pl.multiple_of(row_start, 8)
        v_rows = v_ref[pl.ds(row_start, Tc), :].astype(jnp.float32)   # [Tc, D]
    t_f32 = t.astype(jnp.float32)
    # Row-sum over D routed through the MXU with a ones-vector (keeps XLU free).
    ones_d = jnp.ones((D, 1), jnp.float32)
    diag = lax.dot_general(
        v_rows * t_f32, ones_d,
        dimension_numbers=(((1,), (0,)), ((), ())),
        preferred_element_type=jnp.float32,
    ) * inv_temp                                             # [Tc, 1]
    if single_tile:
        diag_ref[...] = diag
    else:
        diag_ref[pl.ds(row_start, Tc), :] = diag

    # --- v2t: online (flash-style) row logsumexp across column tiles --------
    m_prev = m_r_ref[...]                                    # [B, 1]
    m_new = jnp.maximum(m_prev, jnp.max(s, axis=1, keepdims=True))  # XLU
    p = jnp.exp(s - m_new)                                   # EUP pass 1 (f32)
    # Row-sum of exps on the MXU instead of the XLU.
    ones_c = jnp.ones((Tc, 1), jnp.float32)
    row_sum = lax.dot_general(
        p, ones_c,
        dimension_numbers=(((1,), (0,)), ((), ())),
        preferred_element_type=jnp.float32,
    )                                                        # [B, 1]
    l_r_ref[...] = l_r_ref[...] * jnp.exp(m_prev - m_new) + row_sum
    m_r_ref[...] = m_new

    # --- t2v: column logsumexp is exact within this tile (all B rows here) --
    m_c = jnp.max(s, axis=0, keepdims=True)                  # [1, Tc]  (XLU)
    if use_bf16_col_exp:
        # v6e/v7x only (bf16 EUP); accuracy-gated, default off.
        e_c = jnp.exp((s - m_c).astype(jnp.bfloat16))
        ones_r = jnp.ones((1, B), jnp.bfloat16)
    else:
        e_c = jnp.exp(s - m_c)                               # EUP pass 2
        ones_r = jnp.ones((1, B), jnp.float32)
    # Column-sum of exps on the MXU instead of the XLU.
    col_sum = lax.dot_general(
        ones_r, e_c,
        dimension_numbers=(((1,), (0,)), ((), ())),
        preferred_element_type=jnp.float32,
    )                                                        # [1, Tc]
    lse_c = m_c + jnp.log(col_sum)
    # Tile-local (lse_c - diag) difference: better cancellation than grand sums.
    acc_ref[0] += jnp.sum(lse_c) - jnp.sum(diag)

    # --- finalize on the last column tile ------------------------------------
    @pl.when(j == num_col_tiles - 1)
    def _finalize():
        lse_r = m_r_ref[...] + jnp.log(l_r_ref[...])         # [B, 1]
        row_part = jnp.sum(lse_r - diag_ref[...])            # per-element diffs
        loss_ref[0, 0] = (row_part + acc_ref[0]) * (0.5 / B)


def _vmem_capacity_bytes():
    try:
        info = pltpu.get_tpu_info()
        cap = getattr(info, "vmem_capacity_bytes", None)
        if cap:
            return int(cap)
    except Exception:
        pass
    return 64 * 1024 * 1024  # conservative (v7x per-TensorCore)


def _pick_col_tile(B, max_tile):
    """Largest multiple-of-8 divisor of B that is <= max_tile, else full B."""
    start = (min(max_tile, B) // 8) * 8
    for cand in range(start, 0, -8):
        if B % cand == 0:
            return cand
    # TODO(synk): pad B to a multiple of 8 instead of falling back to a full
    # [B, B] logits tile for odd, very large batch sizes.
    return B


def infonce_loss(video_embeds, text_embeds, temperature, *,
                 col_tile=None, use_bf16_col_exp=False, mxu_bf16_inputs=False):
    """Scalar mean InfoNCE loss (average of v2t and t2v cross entropy)."""
    B, D = video_embeds.shape
    assert text_embeds.shape == (B, D)

    vmem_cap = _vmem_capacity_bytes()
    if col_tile is None:
        # 128 MiB chips (v5e/v6e) can afford 1024-wide column tiles; 64 MiB
        # (v7x per-core) sticks to <=512.
        max_tile = 1024 if vmem_cap >= 100 * 1024 * 1024 else 512
        col_tile = _pick_col_tile(B, max_tile)
    assert B % col_tile == 0
    assert col_tile == B or col_tile % 8 == 0
    num_col_tiles = B // col_tile

    temp = jnp.asarray(temperature, jnp.float32).reshape((1,))
    itemsize = jnp.dtype(video_embeds.dtype).itemsize

    kernel = functools.partial(
        _infonce_kernel,
        single_tile=(num_col_tiles == 1),
        use_bf16_col_exp=use_bf16_col_exp,
        mxu_bf16_inputs=mxu_bf16_inputs,
    )

    def build(video_single_buffered):
        if video_single_buffered:
            # Constant index_map -> the second pipeline buffer is never used.
            video_spec = pl.BlockSpec((B, D), lambda j: (0, 0),
                                      pipeline_mode=pl.Buffered(1))
            video_copies = 1
        else:
            video_spec = pl.BlockSpec((B, D), lambda j: (0, 0))
            video_copies = 2

        # VMEM budget: resident video block(s) + double-buffered text tiles +
        # logits/exp f32 temporaries + lane-padded (B,1) f32 scratches, with
        # 8 MiB headroom below physical capacity.
        need = (video_copies * B * D * itemsize
                + 2 * col_tile * D * itemsize
                + 4 * B * col_tile * 4
                + 3 * B * 128 * 4
                + (2 << 20))
        vmem_limit = int(min(max(int(1.25 * need), 32 << 20),
                             vmem_cap - (8 << 20)))

        return pl.pallas_call(
            kernel,
            out_shape=jax.ShapeDtypeStruct((1, 1), jnp.float32),
            grid_spec=pltpu.PrefetchScalarGridSpec(
                num_scalar_prefetch=0,
                grid=(num_col_tiles,),
                in_specs=[
                    pl.BlockSpec(memory_space=pltpu.SMEM),           # temperature
                    video_spec,                                      # video (resident)
                    pl.BlockSpec((col_tile, D), lambda j: (j, 0)),   # text (streamed)
                ],
                out_specs=pl.BlockSpec(memory_space=pltpu.SMEM),
                scratch_shapes=[
                    pltpu.VMEM((B, 1), jnp.float32),   # online row max  (m_r)
                    pltpu.VMEM((B, 1), jnp.float32),   # online row sum  (l_r)
                    pltpu.VMEM((B, 1), jnp.float32),   # per-row diag    (diag)
                    pltpu.SMEM((1,), jnp.float32),     # t2v (lse_c - diag) acc
                ],
            ),
            compiler_params=pltpu.CompilerParams(
                dimension_semantics=("arbitrary",),    # column axis is a reduction
                vmem_limit_bytes=vmem_limit,
            ),
            cost_estimate=pl.CostEstimate(
                flops=2 * B * B * D + 6 * B * B,
                transcendentals=2 * B * B,
                bytes_accessed=2 * B * D * itemsize + 4,
            ),
        )

    try:
        out = build(True)(temp, video_embeds, text_embeds)
    except Exception:
        # Fallback if this JAX build rejects pipeline_mode=pl.Buffered(1).
        out = build(False)(temp, video_embeds, text_embeds)
    return out[0, 0]


def infonce_loss_ref(video_embeds, text_embeds, temperature):
    """Pure-JAX reference matching the PyTorch module."""
    v = video_embeds.astype(jnp.float32)
    t = text_embeds.astype(jnp.float32)
    logits = (v @ t.T) / temperature
    labels = jnp.arange(v.shape[0])
    lse_r = jax.scipy.special.logsumexp(logits, axis=1)
    lse_c = jax.scipy.special.logsumexp(logits, axis=0)
    diag = logits[labels, labels]
    return (jnp.mean(lse_r - diag) + jnp.mean(lse_c - diag)) / 2.0


if __name__ == "__main__":
    key = jax.random.PRNGKey(0)
    temperature = 0.07  # nn.Parameter initial value

    # Small shape consistent with the module (single-tile path).
    kv, kt = jax.random.split(key)
    B, D = 8, 32
    video = jax.random.normal(kv, (B, D), dtype=jnp.float32)
    text = jax.random.normal(kt, (B, D), dtype=jnp.float32)
    loss = jax.block_until_ready(infonce_loss(video, text, temperature))
    ref = infonce_loss_ref(video, text, temperature)
    assert jnp.allclose(loss, ref, rtol=1e-4, atol=1e-4), (loss, ref)

    # Modest multi-tile check to exercise the streamed / online-LSE path and
    # the MXU-routed exp-sum reductions.
    kv2, kt2 = jax.random.split(jax.random.PRNGKey(0), 2)
    B2, D2 = 256, 128
    video2 = jax.random.normal(kv2, (B2, D2), dtype=jnp.float32)
    text2 = jax.random.normal(kt2, (B2, D2), dtype=jnp.float32)
    loss2 = jax.block_until_ready(
        infonce_loss(video2, text2, temperature, col_tile=128))
    ref2 = infonce_loss_ref(video2, text2, temperature)
    assert jnp.allclose(loss2, ref2, rtol=1e-3, atol=1e-3), (loss2, ref2)

    print("KERNEL_OK")
</pallas_src>

<mosaic_0001>
module attributes {stable_mosaic.version = 11 : i64} {
  func.func @_infonce_kernel(%arg0: i32, %arg1: memref<1xf32, #tpu.memory_space<smem>>, %arg2: memref<8x32xf32, #tpu.memory_space<vmem>>, %arg3: memref<8x32xf32, #tpu.memory_space<vmem>>, %arg4: memref<1x1xf32, #tpu.memory_space<smem>>, %arg5: memref<8x1xf32, #tpu.memory_space<vmem>>, %arg6: memref<8x1xf32, #tpu.memory_space<vmem>>, %arg7: memref<8x1xf32, #tpu.memory_space<vmem>>, %arg8: memref<1xf32, #tpu.memory_space<smem>>) attributes {dimension_semantics = [#tpu.dimension_semantics<arbitrary>], iteration_bounds = array<i64: 1>, scalar_prefetch = 0 : i64, scratch_operands = 4 : i64, tpu.core_type = #tpu.core_type<tc>, window_params = [{transform_indices = @transform_0, window_bounds = array<i64: 1>}, {pipeline_mode = #tpu.pipeline_mode<synchronous>, transform_indices = @transform_1, window_bounds = array<i64: 8, 32>}, {transform_indices = @transform_2, window_bounds = array<i64: 8, 32>}, {transform_indices = @transform_3, window_bounds = array<i64: 1, 1>}]} {
    %c0 = arith.constant 0 : index
    %0 = memref.load %arg1[%c0] : memref<1xf32, #tpu.memory_space<smem>>
    %cst = arith.constant 1.000000e+00 : f32
    %1 = arith.divf %cst, %0 : f32
    %c0_i32 = arith.constant 0 : i32
    %2 = arith.cmpi eq, %arg0, %c0_i32 : i32
    %3 = arith.extui %2 : i1 to i32
    %c0_i32_0 = arith.constant 0 : i32
    %4 = arith.cmpi ne, %3, %c0_i32_0 : i32
    scf.if %4 {
      %cst_30 = arith.constant 0xFF800000 : f32
      %56 = vector.broadcast %cst_30 : f32 to vector<8x1xf32>
      %c0_31 = arith.constant 0 : index
      %c0_32 = arith.constant 0 : index
      %57 = vector.load %arg5[%c0_31, %c0_32] : memref<8x1xf32, #tpu.memory_space<vmem>>, vector<8x1xf32>
      tpu.vector_store %arg5[%c0_31, %c0_32], %56 {strides = array<i32>} : memref<8x1xf32, #tpu.memory_space<vmem>>, vector<8x1xf32>,
      %cst_33 = arith.constant 0.000000e+00 : f32
      %58 = vector.broadcast %cst_33 : f32 to vector<8x1xf32>
      %c0_34 = arith.constant 0 : index
      %c0_35 = arith.constant 0 : index
      %59 = vector.load %arg6[%c0_34, %c0_35] : memref<8x1xf32, #tpu.memory_space<vmem>>, vector<8x1xf32>
      tpu.vector_store %arg6[%c0_34, %c0_35], %58 {strides = array<i32>} : memref<8x1xf32, #tpu.memory_space<vmem>>, vector<8x1xf32>,
      %cst_36 = arith.constant 0.000000e+00 : f32
      %c0_37 = arith.constant 0 : index
      %60 = memref.load %arg8[%c0_37] : memref<1xf32, #tpu.memory_space<smem>>
      memref.store %cst_36, %arg8[%c0_37] : memref<1xf32, #tpu.memory_space<smem>>
    } else {
    }
    %c0_1 = arith.constant 0 : index
    %c0_2 = arith.constant 0 : index
    %5 = vector.load %arg2[%c0_1, %c0_2] : memref<8x32xf32, #tpu.memory_space<vmem>>, vector<8x32xf32>
    %c0_3 = arith.constant 0 : index
    %c0_4 = arith.constant 0 : index
    %6 = vector.load %arg3[%c0_3, %c0_4] : memref<8x32xf32, #tpu.memory_space<vmem>>, vector<8x32xf32>
    %cst_5 = arith.constant dense<0.000000e+00> : vector<8x8xf32>
    %7 = tpu.matmul %5, %6, %cst_5 {dimension_numbers = #tpu.dot_dimension_numbers<[1], [1], [0], [0], [0, 0, 1, 0], [], []>} : vector<8x32xf32>, vector<8x32xf32>, vector<8x8xf32> -> vector<8x8xf32>
    %8 = vector.broadcast %1 : f32 to vector<8x8xf32>
    %9 = arith.mulf %7, %8 : vector<8x8xf32>
    %cst_6 = arith.constant 1.000000e+00 : f32
    %10 = vector.broadcast %cst_6 : f32 to vector<32x1xf32>
    %11 = arith.mulf %5, %6 : vector<8x32xf32>
    %cst_7 = arith.constant dense<0.000000e+00> : vector<8x1xf32>
    %12 = tpu.matmul %11, %10, %cst_7 {dimension_numbers = #tpu.dot_dimension_numbers<[1], [0], [0], [1], [0, 0, 1, 1], [], []>} : vector<8x32xf32>, vector<32x1xf32>, vector<8x1xf32> -> vector<8x1xf32>
    %13 = vector.broadcast %1 : f32 to vector<8x1xf32>
    %14 = arith.mulf %12, %13 : vector<8x1xf32>
    %c0_8 = arith.constant 0 : index
    %c0_9 = arith.constant 0 : index
    %15 = vector.load %arg7[%c0_8, %c0_9] : memref<8x1xf32, #tpu.memory_space<vmem>>, vector<8x1xf32>
    tpu.vector_store %arg7[%c0_8, %c0_9], %14 {strides = array<i32>} : memref<8x1xf32, #tpu.memory_space<vmem>>, vector<8x1xf32>,
    %c0_10 = arith.constant 0 : index
    %c0_11 = arith.constant 0 : index
    %16 = vector.load %arg5[%c0_10, %c0_11] : memref<8x1xf32, #tpu.memory_space<vmem>>, vector<8x1xf32>
    %cst_12 = arith.constant dense<0xFF800000> : vector<8xf32>
    %17 = vector.multi_reduction <maximumf>, %9, %cst_12 [1] : vector<8x8xf32> to vector<8xf32>
    %18 = vector.shape_cast %17 : vector<8xf32> to vector<8x1xf32>
    %19 = arith.maximumf %16, %18 : vector<8x1xf32>
    %20 = vector.broadcast %19 : vector<8x1xf32> to vector<8x8xf32>
    %21 = arith.subf %9, %20 : vector<8x8xf32>
    %22 = math.exp %21 : vector<8x8xf32>
    %cst_13 = arith.constant 1.000000e+00 : f32
    %23 = vector.broadcast %cst_13 : f32 to vector<8x1xf32>
    %cst_14 = arith.constant dense<0.000000e+00> : vector<8x1xf32>
    %24 = tpu.matmul %22, %23, %cst_14 {dimension_numbers = #tpu.dot_dimension_numbers<[1], [0], [0], [1], [0, 0, 1, 1], [], []>} : vector<8x8xf32>, vector<8x1xf32>, vector<8x1xf32> -> vector<8x1xf32>
    %c0_15 = arith.constant 0 : index
    %c0_16 = arith.constant 0 : index
    %25 = vector.load %arg6[%c0_15, %c0_16] : memref<8x1xf32, #tpu.memory_space<vmem>>, vector<8x1xf32>
    %26 = arith.subf %16, %19 : vector<8x1xf32>
    %27 = math.exp %26 : vector<8x1xf32>
    %28 = arith.mulf %25, %27 : vector<8x1xf32>
    %29 = arith.addf %28, %24 : vector<8x1xf32>
    %c0_17 = arith.constant 0 : index
    %c0_18 = arith.constant 0 : index
    %30 = vector.load %arg6[%c0_17, %c0_18] : memref<8x1xf32, #tpu.memory_space<vmem>>, vector<8x1xf32>
    tpu.vector_store %arg6[%c0_17, %c0_18], %29 {strides = array<i32>} : memref<8x1xf32, #tpu.memory_space<vmem>>, vector<8x1xf32>,
    %c0_19 = arith.constant 0 : index
    %c0_20 = arith.constant 0 : index
    %31 = vector.load %arg5[%c0_19, %c0_20] : memref<8x1xf32, #tpu.memory_space<vmem>>, vector<8x1xf32>
    tpu.vector_store %arg5[%c0_19, %c0_20], %19 {strides = array<i32>} : memref<8x1xf32, #tpu.memory_space<vmem>>, vector<8x1xf32>,
    %cst_21 = arith.constant dense<0xFF800000> : vector<8xf32>
    %32 = vector.multi_reduction <maximumf>, %9, %cst_21 [0] : vector<8x8xf32> to vector<8xf32>
    %33 = vector.shape_cast %32 : vector<8xf32> to vector<1x8xf32>
    %34 = vector.broadcast %33 : vector<1x8xf32> to vector<8x8xf32>
    %35 = arith.subf %9, %34 : vector<8x8xf32>
    %36 = math.exp %35 : vector<8x8xf32>
    %cst_22 = arith.constant 1.000000e+00 : f32
    %37 = vector.broadcast %cst_22 : f32 to vector<1x8xf32>
    %cst_23 = arith.constant dense<0.000000e+00> : vector<1x8xf32>
    %38 = tpu.matmul %37, %36, %cst_23 {dimension_numbers = #tpu.dot_dimension_numbers<[1], [0], [0], [1], [0, 0, 1, 1], [], []>} : vector<1x8xf32>, vector<8x8xf32>, vector<1x8xf32> -> vector<1x8xf32>
    %39 = math.log %38 : vector<1x8xf32>
    %40 = arith.addf %33, %39 : vector<1x8xf32>
    %c0_24 = arith.constant 0 : index
    %41 = memref.load %arg8[%c0_24] : memref<1xf32, #tpu.memory_space<smem>>
    %42 = vector.shape_cast %40 : vector<1x8xf32> to vector<1x1x8xf32>
    %cst_25 = arith.constant dense<0.000000e+00> : vector<1xf32>
    %43 = vector.multi_reduction <add>, %42, %cst_25 [1, 2] : vector<1x1x8xf32> to vector<1xf32>
    %44 = vector.shape_cast %43 : vector<1xf32> to vector<1x1x1xf32>
    %45 = vector.extract %44[0, 0, 0] : f32 from vector<1x1x1xf32>
    %46 = vector.shape_cast %14 : vector<8x1xf32> to vector<1x8x1xf32>
    %cst_26 = arith.constant dense<0.000000e+00> : vector<1xf32>
    %47 = vector.multi_reduction <add>, %46, %cst_26 [1, 2] : vector<1x8x1xf32> to vector<1xf32>
    %48 = vector.shape_cast %47 : vector<1xf32> to vector<1x1x1xf32>
    %49 = vector.extract %48[0, 0, 0] : f32 from vector<1x1x1xf32>
    %50 = arith.subf %45, %49 : f32
    %51 = arith.addf %41, %50 : f32
    %c0_27 = arith.constant 0 : index
    %52 = memref.load %arg8[%c0_27] : memref<1xf32, #tpu.memory_space<smem>>
    memref.store %51, %arg8[%c0_27] : memref<1xf32, #tpu.memory_space<smem>>
    %c0_i32_28 = arith.constant 0 : i32
    %53 = arith.cmpi eq, %arg0, %c0_i32_28 : i32
    %54 = arith.extui %53 : i1 to i32
    %c0_i32_29 = arith.constant 0 : i32
    %55 = arith.cmpi ne, %54, %c0_i32_29 : i32
    scf.if %55 {
      %c0_30 = arith.constant 0 : index
      %c0_31 = arith.constant 0 : index
      %56 = vector.load %arg5[%c0_30, %c0_31] : memref<8x1xf32, #tpu.memory_space<vmem>>, vector<8x1xf32>
      %c0_32 = arith.constant 0 : index
      %c0_33 = arith.constant 0 : index
      %57 = vector.load %arg6[%c0_32, %c0_33] : memref<8x1xf32, #tpu.memory_space<vmem>>, vector<8x1xf32>
      %58 = math.log %57 : vector<8x1xf32>
      %59 = arith.addf %56, %58 : vector<8x1xf32>
      %c0_34 = arith.constant 0 : index
      %c0_35 = arith.constant 0 : index
      %60 = vector.load %arg7[%c0_34, %c0_35] : memref<8x1xf32, #tpu.memory_space<vmem>>, vector<8x1xf32>
      %61 = arith.subf %59, %60 : vector<8x1xf32>
      %62 = vector.shape_cast %61 : vector<8x1xf32> to vector<1x8x1xf32>
      %cst_36 = arith.constant dense<0.000000e+00> : vector<1xf32>
      %63 = vector.multi_reduction <add>, %62, %cst_36 [1, 2] : vector<1x8x1xf32> to vector<1xf32>
      %64 = vector.shape_cast %63 : vector<1xf32> to vector<1x1x1xf32>
      %65 = vector.extract %64[0, 0, 0] : f32 from vector<1x1x1xf32>
      %c0_37 = arith.constant 0 : index
      %66 = memref.load %arg8[%c0_37] : memref<1xf32, #tpu.memory_space<smem>>
      %67 = arith.addf %65, %66 : f32
      %cst_38 = arith.constant 6.250000e-02 : f32
      %68 = arith.mulf %67, %cst_38 : f32
      %c0_39 = arith.constant 0 : index
      %c0_40 = arith.constant 0 : index
      %69 = memref.load %arg4[%c0_39, %c0_40] : memref<1x1xf32, #tpu.memory_space<smem>>
      memref.store %68, %arg4[%c0_39, %c0_40] : memref<1x1xf32, #tpu.memory_space<smem>>
    } else {
    }
    return
  }
  func.func @transform_0(%arg0: i32) -> i32 {
    %c0_i32 = arith.constant 0 : i32
    %c0_i32_0 = arith.constant 0 : i32
    return %c0_i32 : i32
  }
  func.func @transform_1(%arg0: i32) -> (i32, i32) {
    %c0_i32 = arith.constant 0 : i32
    %c0_i32_0 = arith.constant 0 : i32
    %c0_i32_1 = arith.constant 0 : i32
    return %c0_i32, %c0_i32_0 : i32, i32
  }
  func.func @transform_2(%arg0: i32) -> (i32, i32) {
    %c0_i32 = arith.constant 0 : i32
    %c0_i32_0 = arith.constant 0 : i32
    return %arg0, %c0_i32 : i32, i32
  }
  func.func @transform_3(%arg0: i32) -> (i32, i32) {
    %c0_i32 = arith.constant 0 : i32
    %c0_i32_0 = arith.constant 0 : i32
    %c0_i32_1 = arith.constant 0 : i32
    return %c0_i32, %c0_i32_0 : i32, i32
  }
}

module attributes {stable_mosaic.version = 11 : i64} {
  func.func @_infonce_kernel(%arg0: i32, %arg1: memref<1xf32, #tpu.memory_space<smem>>, %arg2: memref<8x32xf32, #tpu.memory_space<vmem>>, %arg3: memref<8x32xf32, #tpu.memory_space<vmem>>, %arg4: memref<1x1xf32, #tpu.memory_space<smem>>, %arg5: memref<8x1xf32, #tpu.memory_space<vmem>>, %arg6: memref<8x1xf32, #tpu.memory_space<vmem>>, %arg7: memref<8x1xf32, #tpu.memory_space<vmem>>, %arg8: memref<1xf32, #tpu.memory_space<smem>>) attributes {dimension_semantics = [#tpu.dimension_semantics<arbitrary>], iteration_bounds = array<i64: 1>, scalar_prefetch = 0 : i64, scratch_operands = 4 : i64, tpu.core_type = #tpu.core_type<tc>, window_params = [{transform_indices = @transform_0, window_bounds = array<i64: 1>}, {pipeline_mode = #tpu.pipeline_mode<synchronous>, transform_indices = @transform_1, window_bounds = array<i64: 8, 32>}, {transform_indices = @transform_2, window_bounds = array<i64: 8, 32>}, {transform_indices = @transform_3, window_bounds = array<i64: 1, 1>}]} {
    %c0 = arith.constant 0 : index
    %0 = memref.load %arg1[%c0] : memref<1xf32, #tpu.memory_space<smem>>
    %cst = arith.constant 1.000000e+00 : f32
    %1 = arith.divf %cst, %0 : f32
    %c0_i32 = arith.constant 0 : i32
    %2 = arith.cmpi eq, %arg0, %c0_i32 : i32
    %3 = arith.extui %2 : i1 to i32
    %c0_i32_0 = arith.constant 0 : i32
    %4 = arith.cmpi ne, %3, %c0_i32_0 : i32
    scf.if %4 {
      %cst_30 = arith.constant 0xFF800000 : f32
      %56 = vector.broadcast %cst_30 : f32 to vector<8x1xf32>
      %c0_31 = arith.constant 0 : index
      %c0_32 = arith.constant 0 : index
      %57 = vector.load %arg5[%c0_31, %c0_32] : memref<8x1xf32, #tpu.memory_space<vmem>>, vector<8x1xf32>
      tpu.vector_store %arg5[%c0_31, %c0_32], %56 {strides = array<i32>} : memref<8x1xf32, #tpu.memory_space<vmem>>, vector<8x1xf32>,
      %cst_33 = arith.constant 0.000000e+00 : f32
      %58 = vector.broadcast %cst_33 : f32 to vector<8x1xf32>
      %c0_34 = arith.constant 0 : index
      %c0_35 = arith.constant 0 : index
      %59 = vector.load %arg6[%c0_34, %c0_35] : memref<8x1xf32, #tpu.memory_space<vmem>>, vector<8x1xf32>
      tpu.vector_store %arg6[%c0_34, %c0_35], %58 {strides = array<i32>} : memref<8x1xf32, #tpu.memory_space<vmem>>, vector<8x1xf32>,
      %cst_36 = arith.constant 0.000000e+00 : f32
      %c0_37 = arith.constant 0 : index
      %60 = memref.load %arg8[%c0_37] : memref<1xf32, #tpu.memory_space<smem>>
      memref.store %cst_36, %arg8[%c0_37] : memref<1xf32, #tpu.memory_space<smem>>
    } else {
    }
    %c0_1 = arith.constant 0 : index
    %c0_2 = arith.constant 0 : index
    %5 = vector.load %arg2[%c0_1, %c0_2] : memref<8x32xf32, #tpu.memory_space<vmem>>, vector<8x32xf32>
    %c0_3 = arith.constant 0 : index
    %c0_4 = arith.constant 0 : index
    %6 = vector.load %arg3[%c0_3, %c0_4] : memref<8x32xf32, #tpu.memory_space<vmem>>, vector<8x32xf32>
    %cst_5 = arith.constant dense<0.000000e+00> : vector<8x8xf32>
    %7 = tpu.matmul %5, %6, %cst_5 {dimension_numbers = #tpu.dot_dimension_numbers<[1], [1], [0], [0], [0, 0, 1, 0], [], []>} : vector<8x32xf32>, vector<8x32xf32>, vector<8x8xf32> -> vector<8x8xf32>
    %8 = vector.broadcast %1 : f32 to vector<8x8xf32>
    %9 = arith.mulf %7, %8 : vector<8x8xf32>
    %cst_6 = arith.constant 1.000000e+00 : f32
    %10 = vector.broadcast %cst_6 : f32 to vector<32x1xf32>
    %11 = arith.mulf %5, %6 : vector<8x32xf32>
    %cst_7 = arith.constant dense<0.000000e+00> : vector<8x1xf32>
    %12 = tpu.matmul %11, %10, %cst_7 {dimension_numbers = #tpu.dot_dimension_numbers<[1], [0], [0], [1], [0, 0, 1, 1], [], []>} : vector<8x32xf32>, vector<32x1xf32>, vector<8x1xf32> -> vector<8x1xf32>
    %13 = vector.broadcast %1 : f32 to vector<8x1xf32>
    %14 = arith.mulf %12, %13 : vector<8x1xf32>
    %c0_8 = arith.constant 0 : index
    %c0_9 = arith.constant 0 : index
    %15 = vector.load %arg7[%c0_8, %c0_9] : memref<8x1xf32, #tpu.memory_space<vmem>>, vector<8x1xf32>
    tpu.vector_store %arg7[%c0_8, %c0_9], %14 {strides = array<i32>} : memref<8x1xf32, #tpu.memory_space<vmem>>, vector<8x1xf32>,
    %c0_10 = arith.constant 0 : index
    %c0_11 = arith.constant 0 : index
    %16 = vector.load %arg5[%c0_10, %c0_11] : memref<8x1xf32, #tpu.memory_space<vmem>>, vector<8x1xf32>
    %cst_12 = arith.constant dense<0xFF800000> : vector<8xf32>
    %17 = vector.multi_reduction <maximumf>, %9, %cst_12 [1] : vector<8x8xf32> to vector<8xf32>
    %18 = vector.shape_cast %17 : vector<8xf32> to vector<8x1xf32>
    %19 = arith.maximumf %16, %18 : vector<8x1xf32>
    %20 = vector.broadcast %19 : vector<8x1xf32> to vector<8x8xf32>
    %21 = arith.subf %9, %20 : vector<8x8xf32>
    %22 = math.exp %21 : vector<8x8xf32>
    %cst_13 = arith.constant 1.000000e+00 : f32
    %23 = vector.broadcast %cst_13 : f32 to vector<8x1xf32>
    %cst_14 = arith.constant dense<0.000000e+00> : vector<8x1xf32>
    %24 = tpu.matmul %22, %23, %cst_14 {dimension_numbers = #tpu.dot_dimension_numbers<[1], [0], [0], [1], [0, 0, 1, 1], [], []>} : vector<8x8xf32>, vector<8x1xf32>, vector<8x1xf32> -> vector<8x1xf32>
    %c0_15 = arith.constant 0 : index
    %c0_16 = arith.constant 0 : index
    %25 = vector.load %arg6[%c0_15, %c0_16] : memref<8x1xf32, #tpu.memory_space<vmem>>, vector<8x1xf32>
    %26 = arith.subf %16, %19 : vector<8x1xf32>
    %27 = math.exp %26 : vector<8x1xf32>
    %28 = arith.mulf %25, %27 : vector<8x1xf32>
    %29 = arith.addf %28, %24 : vector<8x1xf32>
    %c0_17 = arith.constant 0 : index
    %c0_18 = arith.constant 0 : index
    %30 = vector.load %arg6[%c0_17, %c0_18] : memref<8x1xf32, #tpu.memory_space<vmem>>, vector<8x1xf32>
    tpu.vector_store %arg6[%c0_17, %c0_18], %29 {strides = array<i32>} : memref<8x1xf32, #tpu.memory_space<vmem>>, vector<8x1xf32>,
    %c0_19 = arith.constant 0 : index
    %c0_20 = arith.constant 0 : index
    %31 = vector.load %arg5[%c0_19, %c0_20] : memref<8x1xf32, #tpu.memory_space<vmem>>, vector<8x1xf32>
    tpu.vector_store %arg5[%c0_19, %c0_20], %19 {strides = array<i32>} : memref<8x1xf32, #tpu.memory_space<vmem>>, vector<8x1xf32>,
    %cst_21 = arith.constant dense<0xFF800000> : vector<8xf32>
    %32 = vector.multi_reduction <maximumf>, %9, %cst_21 [0] : vector<8x8xf32> to vector<8xf32>
    %33 = vector.shape_cast %32 : vector<8xf32> to vector<1x8xf32>
    %34 = vector.broadcast %33 : vector<1x8xf32> to vector<8x8xf32>
    %35 = arith.subf %9, %34 : vector<8x8xf32>
    %36 = math.exp %35 : vector<8x8xf32>
    %cst_22 = arith.constant 1.000000e+00 : f32
    %37 = vector.broadcast %cst_22 : f32 to vector<1x8xf32>
    %cst_23 = arith.constant dense<0.000000e+00> : vector<1x8xf32>
    %38 = tpu.matmul %37, %36, %cst_23 {dimension_numbers = #tpu.dot_dimension_numbers<[1], [0], [0], [1], [0, 0, 1, 1], [], []>} : vector<1x8xf32>, vector<8x8xf32>, vector<1x8xf32> -> vector<1x8xf32>
    %39 = math.log %38 : vector<1x8xf32>
    %40 = arith.addf %33, %39 : vector<1x8xf32>
    %c0_24 = arith.constant 0 : index
    %41 = memref.load %arg8[%c0_24] : memref<1xf32, #tpu.memory_space<smem>>
    %42 = vector.shape_cast %40 : vector<1x8xf32> to vector<1x1x8xf32>
    %cst_25 = arith.constant dense<0.000000e+00> : vector<1xf32>
    %43 = vector.multi_reduction <add>, %42, %cst_25 [1, 2] : vector<1x1x8xf32> to vector<1xf32>
    %44 = vector.shape_cast %43 : vector<1xf32> to vector<1x1x1xf32>
    %45 = vector.extract %44[0, 0, 0] : f32 from vector<1x1x1xf32>
    %46 = vector.shape_cast %14 : vector<8x1xf32> to vector<1x8x1xf32>
    %cst_26 = arith.constant dense<0.000000e+00> : vector<1xf32>
    %47 = vector.multi_reduction <add>, %46, %cst_26 [1, 2] : vector<1x8x1xf32> to vector<1xf32>
    %48 = vector.shape_cast %47 : vector<1xf32> to vector<1x1x1xf32>
    %49 = vector.extract %48[0, 0, 0] : f32 from vector<1x1x1xf32>
    %50 = arith.subf %45, %49 : f32
    %51 = arith.addf %41, %50 : f32
    %c0_27 = arith.constant 0 : index
    %52 = memref.load %arg8[%c0_27] : memref<1xf32, #tpu.memory_space<smem>>
    memref.store %51, %arg8[%c0_27] : memref<1xf32, #tpu.memory_space<smem>>
    %c0_i32_28 = arith.constant 0 : i32
    %53 = arith.cmpi eq, %arg0, %c0_i32_28 : i32
    %54 = arith.extui %53 : i1 to i32
    %c0_i32_29 = arith.constant 0 : i32
    %55 = arith.cmpi ne, %54, %c0_i32_29 : i32
    scf.if %55 {
      %c0_30 = arith.constant 0 : index
      %c0_31 = arith.constant 0 : index
      %56 = vector.load %arg5[%c0_30, %c0_31] : memref<8x1xf32, #tpu.memory_space<vmem>>, vector<8x1xf32>
      %c0_32 = arith.constant 0 : index
      %c0_33 = arith.constant 0 : index
      %57 = vector.load %arg6[%c0_32, %c0_33] : memref<8x1xf32, #tpu.memory_space<vmem>>, vector<8x1xf32>
      %58 = math.log %57 : vector<8x1xf32>
      %59 = arith.addf %56, %58 : vector<8x1xf32>
      %c0_34 = arith.constant 0 : index
      %c0_35 = arith.constant 0 : index
      %60 = vector.load %arg7[%c0_34, %c0_35] : memref<8x1xf32, #tpu.memory_space<vmem>>, vector<8x1xf32>
      %61 = arith.subf %59, %60 : vector<8x1xf32>
      %62 = vector.shape_cast %61 : vector<8x1xf32> to vector<1x8x1xf32>
      %cst_36 = arith.constant dense<0.000000e+00> : vector<1xf32>
      %63 = vector.multi_reduction <add>, %62, %cst_36 [1, 2] : vector<1x8x1xf32> to vector<1xf32>
      %64 = vector.shape_cast %63 : vector<1xf32> to vector<1x1x1xf32>
      %65 = vector.extract %64[0, 0, 0] : f32 from vector<1x1x1xf32>
      %c0_37 = arith.constant 0 : index
      %66 = memref.load %arg8[%c0_37] : memref<1xf32, #tpu.memory_space<smem>>
      %67 = arith.addf %65, %66 : f32
      %cst_38 = arith.constant 6.250000e-02 : f32
      %68 = arith.mulf %67, %cst_38 : f32
      %c0_39 = arith.constant 0 : index
      %c0_40 = arith.constant 0 : index
      %69 = memref.load %arg4[%c0_39, %c0_40] : memref<1x1xf32, #tpu.memory_space<smem>>
      memref.store %68, %arg4[%c0_39, %c0_40] : memref<1x1xf32, #tpu.memory_space<smem>>
    } else {
    }
    return
  }
  func.func @transform_0(%arg0: i32) -> i32 {
    %c0_i32 = arith.constant 0 : i32
    %c0_i32_0 = arith.constant 0 : i32
    return %c0_i32 : i32
  }
  func.func @transform_1(%arg0: i32) -> (i32, i32) {
    %c0_i32 = arith.constant 0 : i32
    %c0_i32_0 = arith.constant 0 : i32
    %c0_i32_1 = arith.constant 0 : i32
    return %c0_i32, %c0_i32_0 : i32, i32
  }
  func.func @transform_2(%arg0: i32) -> (i32, i32) {
    %c0_i32 = arith.constant 0 : i32
    %c0_i32_0 = arith.constant 0 : i32
    return %arg0, %c0_i32 : i32, i32
  }
  func.func @transform_3(%arg0: i32) -> (i32, i32) {
    %c0_i32 = arith.constant 0 : i32
    %c0_i32_0 = arith.constant 0 : i32
    %c0_i32_1 = arith.constant 0 : i32
    return %c0_i32, %c0_i32_0 : i32, i32
  }
}

</mosaic_0001>

<llo_original>
// kernel: tpu_custom_call.1
$region0: #{tpu_custom_call.1}
  #allocation0 [shape = 'u32[]', space=smem, size = 0x4, offset = 0x4, fixed_abs, tag = 'smem constant byte address 0x4 - core index']
  #allocation1 [shape = 'u32[144,128]{1,0:T(1,128)}', space=vmem, size = 0x12000, scoped, tag = 'internal scratch']
  #allocation2 [shape = 'f32[8,1]{1,0:T(8,128)}', space=vmem, size = 0x1000, scoped, tag = 'scratch operand']
  #allocation3 [shape = 'f32[8,1]{1,0:T(8,128)}', space=vmem, size = 0x1000, scoped, tag = 'scratch operand']
  #allocation4 [shape = 'f32[8,1]{1,0:T(8,128)}', space=vmem, size = 0x1000, scoped, tag = 'scratch operand']
  #allocation5 [shape = 'f32[1]{0:T(128)}', space=smem, size = 0x200, scoped, tag = 'scratch operand']
  #allocation6 [shape = 'f32[1]{0:T(128)S(6)}', space=smem, size = 0x200, scoped, tag = 'scoped memory for tpu_custom_call.1']
  %s0 = inlined_call_operand.<no memory space> [shape: f32[1], index: 0, kind: input, shape index: {}]
  %s1 = inlined_call_operand.hbm [shape: f32[8,32], index: 1, kind: input, shape index: {}]
  %s2 = inlined_call_operand.hbm [shape: f32[8,32], index: 2, kind: input, shape index: {}]
  %s3 = inlined_call_operand.hbm [shape: f32[1,1], index: 3, kind: output, shape index: {}]
  %s4 = sld [smem:[#allocation0]]
  $region38: #{tpu_custom_call.1} parent=0
    _
  %s6 = ssub.s32 1, %s4
  %s7 = scalar_select 0, %s6, %s4
  %8 = sst [smem:[#allocation6]] %s0
  $region1: #{tpu_custom_call.1} parent=0
    #allocation7 [shape = 'u8[4096]{0}', space=vmem, size = 0x1000, scoped, tag = 'input window, operand 1, single buffered']
    #allocation8 [shape = 's32[1]{0}', space=sflag, size = 0x4, scoped, tag = 'scoped memory for tpu_custom_call.1']
    #allocation9 [shape = 's32[1]{0}', space=sflag, size = 0x4, scoped, tag = 'scoped memory for tpu_custom_call.1']
    #allocation10 [shape = 'u8[4096]{0}', space=vmem, size = 0x1000, scoped, tag = 'input window, operand 2, single buffered']
    #allocation11 [shape = 's32[1]{0}', space=sflag, size = 0x4, scoped, tag = 'scoped memory for tpu_custom_call.1']
    #allocation12 [shape = 'u8[512]{0}', space=smem, size = 0x200, scoped, tag = 'output window, operand 0, single buffered']
    %9 = vsyncpa [#allocation8], 0
    %10 = vsyncpa [#allocation11], 0
    %11 = vsyncpa [#allocation9], 0
    // Predicated region
    $region2: #{tpu_custom_call.1} parent=1 // pred_check
      _
    $region3: #{tpu_custom_call.1} parent=1 // pred_check_branch
      %13 = sbr.rel (0) target = $region5
    $region4: #{tpu_custom_call.1} parent=1 // pred_region
      _
    $region5: #{tpu_custom_call.1} parent=1 // pred_fallthru
      _
    // Predicated region
    $region6: #{tpu_custom_call.1} parent=1 // pred_check
      _
    $region7: #{tpu_custom_call.1} parent=1 // pred_check_branch
      %15 = sbr.rel (0) target = $region9
    $region8: #{tpu_custom_call.1} parent=1 // pred_region
      %s17 = ssub.s32 128, 128
      %18 = vsyncadd [#allocation8], %s17
      %s20 = sshll.u32 [#allocation7], 4
      %s21 = int_to_ptr.vmem [resolvable:$true] %s20
      %23 = dma.hbm_to_vmem [thread:$0]  %s1, 128, %s21, [#allocation8]
    $region9: #{tpu_custom_call.1} parent=1 // pred_fallthru
      _
    // Predicated region
    $region10: #{tpu_custom_call.1} parent=1 // pred_check
      _
    $region11: #{tpu_custom_call.1} parent=1 // pred_check_branch
      %25 = sbr.rel (0) target = $region13
    $region12: #{tpu_custom_call.1} parent=1 // pred_region
      %s27 = ssub.s32 128, 128
      %28 = vsyncadd [#allocation11], %s27
      %s30 = sshll.u32 [#allocation10], 4
      %s31 = int_to_ptr.vmem [resolvable:$true] %s30
      %33 = dma.hbm_to_vmem [thread:$0]  %s2, 128, %s31, [#allocation11]
    $region13: #{tpu_custom_call.1} parent=1 // pred_fallthru
      _
    // Predicated region
    $region14: #{tpu_custom_call.1} parent=1 // pred_check
      _
    $region15: #{tpu_custom_call.1} parent=1 // pred_check_branch
      %35 = sbr.rel (0) target = $region17
    $region16: #{tpu_custom_call.1} parent=1 // pred_region
      %36 = dma.done [#allocation8], 128
    $region17: #{tpu_custom_call.1} parent=1 // pred_fallthru
      _
    // Predicated region
    $region18: #{tpu_custom_call.1} parent=1 // pred_check
      _
    $region19: #{tpu_custom_call.1} parent=1 // pred_check_branch
      %38 = sbr.rel (0) target = $region21
    $region20: #{tpu_custom_call.1} parent=1 // pred_region
      %39 = dma.done [#allocation11], 128
    $region21: #{tpu_custom_call.1} parent=1 // pred_fallthru
      _
    %s40 = sld [smem:[#allocation6]]
    %v41 = vstv %s40
    %v42 = vrcp.pop %v41
    %s43 = vtos %v42
    %p44 = scmp.eq.s32.totalorder 0, 0
    // Predicated region
    $region22: #{tpu_custom_call.1} parent=1 // pred_check
      %p45 = pneg %p44
    $region23: #{tpu_custom_call.1} parent=1 // pred_check_branch
      %47 = sbr.rel (%p45) target = $region25
    $region24: #{tpu_custom_call.1} parent=1 // pred_region
      %vm48 = vcmask 7168
      %49 = vst.msk [vmem:[#allocation2] sm:$0xff] %vm48, -inf
      %50 = vst.msk [vmem:[#allocation3] sm:$0xff] %vm48, 0.0
      %s51 = scalar_lea.smem [#allocation5], 0
      %52 = sst [smem:[%s51]] 0.0
    $region25: #{tpu_custom_call.1} parent=1 // pred_fallthru
      _
    %v53 = vld [vmem:[#allocation7] sm:$0xff]
    %v54 = vld [vmem:[#allocation10] sm:$0xff]
    %vm55 = vcmask 261120
    %v57 = vsel %vm55, %v53, 0
    %v60 = vsel %vm55, %v54, 0
    %62 = vmatprep.subr.mxu0 0.0
    %63 = vmatpush1.xpose.msra.mxu0 %v60
    %64 = vmatprep.subr.mxu0 0.0
    %65 = vmatpush1.xpose.msra.mxu0 0.0
    %66 = vmatprep.subr.mxu0 0.0
    %67 = vmatpush1.xpose.msra.mxu0 0.0
    %68 = vmatprep.subr.mxu0 0.0
    %69 = vmatpush1.xpose.msra.mxu0 0.0
    %70 = vmatprep.subr.mxu0 0.0
    %71 = vmatpush1.xpose.msra.mxu0 0.0
    %72 = vmatprep.subr.mxu0 0.0
    %73 = vmatpush1.xpose.msra.mxu0 0.0
    %74 = vmatprep.subr.mxu0 0.0
    %75 = vmatpush1.xpose.msra.mxu0 0.0
    %76 = vmatprep.subr.mxu0 0.0
    %77 = vmatpush1.xpose.msra.mxu0 0.0
    %78 = vmatprep.subr.mxu0 0.0
    %79 = vmatpush1.xpose.msra.mxu0 0.0
    %80 = vmatprep.subr.mxu0 0.0
    %81 = vmatpush1.xpose.msra.mxu0 0.0
    %82 = vmatprep.subr.mxu0 0.0
    %83 = vmatpush1.xpose.msra.mxu0 0.0
    %84 = vmatprep.subr.mxu0 0.0
    %85 = vmatpush1.xpose.msra.mxu0 0.0
    %86 = vmatprep.subr.mxu0 0.0
    %87 = vmatpush1.xpose.msra.mxu0 0.0
    %88 = vmatprep.subr.mxu0 0.0
    %89 = vmatpush1.xpose.msra.mxu0 0.0
    %90 = vmatprep.subr.mxu0 0.0
    %91 = vmatpush1.xpose.msra.mxu0 0.0
    %92 = vmatprep.subr.mxu0 0.0
    %93 = vmatpush1.xpose.msra.mxu0 0.0
    %94 = vmatprep.subr.mxu0 0.0
    %95 = vmatpush1.xpose.msra.mxu0 0.0
    %96 = vmatprep.subr.mxu0 0.0
    %97 = vmatpush1.xpose.msra.mxu0 0.0
    %98 = vmatprep.subr.mxu0 0.0
    %99 = vmatpush1.xpose.msra.mxu0 0.0
    %100 = vmatprep.subr.mxu0 0.0
    %101 = vmatpush1.xpose.msra.mxu0 0.0
    %102 = vmatprep.subr.mxu0 0.0
    %103 = vmatpush1.xpose.msra.mxu0 0.0
    %104 = vmatprep.subr.mxu0 0.0
    %105 = vmatpush1.xpose.msra.mxu0 0.0
    %106 = vmatprep.subr.mxu0 0.0
    %107 = vmatpush1.xpose.msra.mxu0 0.0
    %108 = vmatprep.subr.mxu0 0.0
    %109 = vmatpush1.xpose.msra.mxu0 0.0
    %110 = vmatprep.subr.mxu0 0.0
    %111 = vmatpush1.xpose.msra.mxu0 0.0
    %112 = vmatprep.subr.mxu0 0.0
    %113 = vmatpush1.xpose.msra.mxu0 0.0
    %114 = vmatprep.subr.mxu0 0.0
    %115 = vmatpush1.xpose.msra.mxu0 0.0
    %116 = vmatprep.subr.mxu0 0.0
    %117 = vmatpush1.xpose.msra.mxu0 0.0
    %118 = vmatprep.subr.mxu0 0.0
    %119 = vmatpush1.xpose.msra.mxu0 0.0
    %120 = vmatprep.subr.mxu0 0.0
    %121 = vmatpush1.xpose.msra.mxu0 0.0
    %122 = vmatprep.subr.mxu0 0.0
    %123 = vmatpush1.xpose.msra.mxu0 0.0
    %124 = vmatprep.subr.mxu0 0.0
    %125 = vmatpush1.xpose.msra.mxu0 0.0
    %126 = vmatprep.mubr.f32.mxu0 0.0
    %127 = vmatmul.mubr.f32.gmra.mrb[0].mxu0 %v57
    %v128 = vpop.f32.mrb[0].mxu0
    %v129 = vadd.f32 0.0, %v128
    %v130 = vpop.f32.mrb[0].mxu0
    %131 = vdwg.mxu0
    %v132 = vstv %s43
    %v133 = vmul.f32 %v129, %v132
    %v134 = vmul.f32 %v53, %v54
    %v136 = vsel %vm55, %v134, 0
    %138 = vmatprep.subr.mxu0 0.0
    %139 = vmatpush1.msra.mxu0 1.0
    %140 = vmatprep.subr.mxu0 0.0
    %141 = vmatpush1.msra.mxu0 1.0
    %142 = vmatprep.subr.mxu0 0.0
    %143 = vmatpush1.msra.mxu0 1.0
    %144 = vmatprep.subr.mxu0 0.0
    %145 = vmatpush1.msra.mxu0 1.0
    %146 = vmatprep.subr.mxu0 0.0
    %147 = vmatpush1.msra.mxu0 0.0
    %148 = vmatprep.subr.mxu0 0.0
    %149 = vmatpush1.msra.mxu0 0.0
    %150 = vmatprep.subr.mxu0 0.0
    %151 = vmatpush1.msra.mxu0 0.0
    %152 = vmatprep.subr.mxu0 0.0
    %153 = vmatpush1.msra.mxu0 0.0
    %154 = vmatprep.subr.mxu0 0.0
    %155 = vmatpush1.msra.mxu0 0.0
    %156 = vmatprep.subr.mxu0 0.0
    %157 = vmatpush1.msra.mxu0 0.0
    %158 = vmatprep.subr.mxu0 0.0
    %159 = vmatpush1.msra.mxu0 0.0
    %160 = vmatprep.subr.mxu0 0.0
    %161 = vmatpush1.msra.mxu0 0.0
    %162 = vmatprep.subr.mxu0 0.0
    %163 = vmatpush1.msra.mxu0 0.0
    %164 = vmatprep.subr.mxu0 0.0
    %165 = vmatpush1.msra.mxu0 0.0
    %166 = vmatprep.subr.mxu0 0.0
    %167 = vmatpush1.msra.mxu0 0.0
    %168 = vmatprep.subr.mxu0 0.0
    %169 = vmatpush1.msra.mxu0 0.0
    %170 = vmatprep.subr.mxu0 0.0
    %171 = vmatpush1.msra.mxu0 0.0
    %172 = vmatprep.subr.mxu0 0.0
    %173 = vmatpush1.msra.mxu0 0.0
    %174 = vmatprep.subr.mxu0 0.0
    %175 = vmatpush1.msra.mxu0 0.0
    %176 = vmatprep.subr.mxu0 0.0
    %177 = vmatpush1.msra.mxu0 0.0
    %178 = vmatprep.subr.mxu0 0.0
    %179 = vmatpush1.msra.mxu0 0.0
    %180 = vmatprep.subr.mxu0 0.0
    %181 = vmatpush1.msra.mxu0 0.0
    %182 = vmatprep.subr.mxu0 0.0
    %183 = vmatpush1.msra.mxu0 0.0
    %184 = vmatprep.subr.mxu0 0.0
    %185 = vmatpush1.msra.mxu0 0.0
    %186 = vmatprep.subr.mxu0 0.0
    %187 = vmatpush1.msra.mxu0 0.0
    %188 = vmatprep.subr.mxu0 0.0
    %189 = vmatpush1.msra.mxu0 0.0
    %190 = vmatprep.subr.mxu0 0.0
    %191 = vmatpush1.msra.mxu0 0.0
    %192 = vmatprep.subr.mxu0 0.0
    %193 = vmatpush1.msra.mxu0 0.0
    %194 = vmatprep.subr.mxu0 0.0
    %195 = vmatpush1.msra.mxu0 0.0
    %196 = vmatprep.subr.mxu0 0.0
    %197 = vmatpush1.msra.mxu0 0.0
    %198 = vmatprep.subr.mxu0 0.0
    %199 = vmatpush1.msra.mxu0 0.0
    %200 = vmatprep.subr.mxu0 0.0
    %201 = vmatpush1.msra.mxu0 0.0
    %202 = vmatprep.mubr.f32.mxu0 0.0
    %203 = vmatmul.mubr.f32.gmra.mrb[0].mxu0 %v136
    %v204 = vpop.f32.mrb[0].mxu0
    %v205 = vadd.f32 0.0, %v204
    %v206 = vpop.f32.mrb[0].mxu0
    %207 = vdwg.mxu0
    %v208 = vmul.f32 %v205, %v132
    %vm209 = vcmask 7168
    %210 = vst.msk [vmem:[#allocation4] sm:$0xff] %vm209, %v208
    %v211 = vld [vmem:[#allocation2] sm:$0xff]
    %vm212 = vcmask 64512
    %v213 = vsel %vm212, %v133, -inf
    %214 = vmax.xlane.f32.xlu0 %v213
    %v215 = vpop.xlane.xlu0 %214
    %v216 = vmax.f32 %v211, %v215
    %218 = vset.pattern.permute.xlu0 0
    %219 = vperm.xlu0 %218, %v216
    %v220 = vpop.permute.xlu0 %219
    %v222 = vsub.f32 %v133, %v220
    %v223 = vmul.f32 %v222, 1.442695
    %v224 = vpow.pop %v223
    %v226 = vsel %vm212, %v224, 0
    %228 = vmatprep.subr.mxu0 0.0
    %229 = vmatpush1.msra.mxu0 1.0
    %230 = vmatprep.subr.mxu0 0.0
    %231 = vmatpush1.msra.mxu0 0.0
    %232 = vmatprep.subr.mxu0 0.0
    %233 = vmatpush1.msra.mxu0 0.0
    %234 = vmatprep.subr.mxu0 0.0
    %235 = vmatpush1.msra.mxu0 0.0
    %236 = vmatprep.subr.mxu0 0.0
    %237 = vmatpush1.msra.mxu0 0.0
    %238 = vmatprep.subr.mxu0 0.0
    %239 = vmatpush1.msra.mxu0 0.0
    %240 = vmatprep.subr.mxu0 0.0
    %241 = vmatpush1.msra.mxu0 0.0
    %242 = vmatprep.subr.mxu0 0.0
    %243 = vmatpush1.msra.mxu0 0.0
    %244 = vmatprep.subr.mxu0 0.0
    %245 = vmatpush1.msra.mxu0 0.0
    %246 = vmatprep.subr.mxu0 0.0
    %247 = vmatpush1.msra.mxu0 0.0
    %248 = vmatprep.subr.mxu0 0.0
    %249 = vmatpush1.msra.mxu0 0.0
    %250 = vmatprep.subr.mxu0 0.0
    %251 = vmatpush1.msra.mxu0 0.0
    %252 = vmatprep.subr.mxu0 0.0
    %253 = vmatpush1.msra.mxu0 0.0
    %254 = vmatprep.subr.mxu0 0.0
    %255 = vmatpush1.msra.mxu0 0.0
    %256 = vmatprep.subr.mxu0 0.0
    %257 = vmatpush1.msra.mxu0 0.0
    %258 = vmatprep.subr.mxu0 0.0
    %259 = vmatpush1.msra.mxu0 0.0
    %260 = vmatprep.subr.mxu0 0.0
    %261 = vmatpush1.msra.mxu0 0.0
    %262 = vmatprep.subr.mxu0 0.0
    %263 = vmatpush1.msra.mxu0 0.0
    %264 = vmatprep.subr.mxu0 0.0
    %265 = vmatpush1.msra.mxu0 0.0
    %266 = vmatprep.subr.mxu0 0.0
    %267 = vmatpush1.msra.mxu0 0.0
    %268 = vmatprep.subr.mxu0 0.0
    %269 = vmatpush1.msra.mxu0 0.0
    %270 = vmatprep.subr.mxu0 0.0
    %271 = vmatpush1.msra.mxu0 0.0
    %272 = vmatprep.subr.mxu0 0.0
    %273 = vmatpush1.msra.mxu0 0.0
    %274 = vmatprep.subr.mxu0 0.0
    %275 = vmatpush1.msra.mxu0 0.0
    %276 = vmatprep.subr.mxu0 0.0
    %277 = vmatpush1.msra.mxu0 0.0
    %278 = vmatprep.subr.mxu0 0.0
    %279 = vmatpush1.msra.mxu0 0.0
    %280 = vmatprep.subr.mxu0 0.0
    %281 = vmatpush1.msra.mxu0 0.0
    %282 = vmatprep.subr.mxu0 0.0
    %283 = vmatpush1.msra.mxu0 0.0
    %284 = vmatprep.subr.mxu0 0.0
    %285 = vmatpush1.msra.mxu0 0.0
    %286 = vmatprep.subr.mxu0 0.0
    %287 = vmatpush1.msra.mxu0 0.0
    %288 = vmatprep.subr.mxu0 0.0
    %289 = vmatpush1.msra.mxu0 0.0
    %290 = vmatprep.subr.mxu0 0.0
    %291 = vmatpush1.msra.mxu0 0.0
    %292 = vmatprep.mubr.f32.mxu0 0.0
    %293 = vmatmul.mubr.f32.gmra.mrb[0].mxu0 %v226
    %v294 = vpop.f32.mrb[0].mxu0
    %v295 = vadd.f32 0.0, %v294
    %v296 = vpop.f32.mrb[0].mxu0
    %297 = vdwg.mxu0
    %v298 = vld [vmem:[#allocation3] sm:$0xff]
    %v299 = vsub.f32 %v211, %v216
    %v300 = vmul.f32 %v299, 1.442695
    %v301 = vpow.pop %v300
    %v302 = vmul.f32 %v298, %v301
    %v303 = vadd.f32 %v302, %v295
    %304 = vst.msk [vmem:[#allocation3] sm:$0xff] %vm209, %v303
    %305 = vst.msk [vmem:[#allocation2] sm:$0xff] %vm209, %v216
    %v306 = vrot.slane %v213, 4
    %v307 = vmax.f32 %v213, %v306
    %v308 = vrot.slane %v307, 2
    %v309 = vmax.f32 %v307, %v308
    %v310 = vrot.slane %v309, 1
    %v311 = vmax.f32 %v309, %v310
    %v312 = vsub.f32 %v133, %v311
    %v313 = vmul.f32 %v312, 1.442695
    %v314 = vpow.pop %v313
    %v316 = vsel %vm212, 1.0, 0
    %318 = vmatprep.subr.mxu0 0.0
    %319 = vmatpush1.msra.mxu0 %v314
    %320 = vmatprep.subr.mxu0 0.0
    %321 = vmatpush1.msra.mxu0 0.0
    %322 = vmatprep.subr.mxu0 0.0
    %323 = vmatpush1.msra.mxu0 0.0
    %324 = vmatprep.subr.mxu0 0.0
    %325 = vmatpush1.msra.mxu0 0.0
    %326 = vmatprep.subr.mxu0 0.0
    %327 = vmatpush1.msra.mxu0 0.0
    %328 = vmatprep.subr.mxu0 0.0
    %329 = vmatpush1.msra.mxu0 0.0
    %330 = vmatprep.subr.mxu0 0.0
    %331 = vmatpush1.msra.mxu0 0.0
    %332 = vmatprep.subr.mxu0 0.0
    %333 = vmatpush1.msra.mxu0 0.0
    %334 = vmatprep.subr.mxu0 0.0
    %335 = vmatpush1.msra.mxu0 0.0
    %336 = vmatprep.subr.mxu0 0.0
    %337 = vmatpush1.msra.mxu0 0.0
    %338 = vmatprep.subr.mxu0 0.0
    %339 = vmatpush1.msra.mxu0 0.0
    %340 = vmatprep.subr.mxu0 0.0
    %341 = vmatpush1.msra.mxu0 0.0
    %342 = vmatprep.subr.mxu0 0.0
    %343 = vmatpush1.msra.mxu0 0.0
    %344 = vmatprep.subr.mxu0 0.0
    %345 = vmatpush1.msra.mxu0 0.0
    %346 = vmatprep.subr.mxu0 0.0
    %347 = vmatpush1.msra.mxu0 0.0
    %348 = vmatprep.subr.mxu0 0.0
    %349 = vmatpush1.msra.mxu0 0.0
    %350 = vmatprep.subr.mxu0 0.0
    %351 = vmatpush1.msra.mxu0 0.0
    %352 = vmatprep.subr.mxu0 0.0
    %353 = vmatpush1.msra.mxu0 0.0
    %354 = vmatprep.subr.mxu0 0.0
    %355 = vmatpush1.msra.mxu0 0.0
    %356 = vmatprep.subr.mxu0 0.0
    %357 = vmatpush1.msra.mxu0 0.0
    %358 = vmatprep.subr.mxu0 0.0
    %359 = vmatpush1.msra.mxu0 0.0
    %360 = vmatprep.subr.mxu0 0.0
    %361 = vmatpush1.msra.mxu0 0.0
    %362 = vmatprep.subr.mxu0 0.0
    %363 = vmatpush1.msra.mxu0 0.0
    %364 = vmatprep.subr.mxu0 0.0
    %365 = vmatpush1.msra.mxu0 0.0
    %366 = vmatprep.subr.mxu0 0.0
    %367 = vmatpush1.msra.mxu0 0.0
    %368 = vmatprep.subr.mxu0 0.0
    %369 = vmatpush1.msra.mxu0 0.0
    %370 = vmatprep.subr.mxu0 0.0
    %371 = vmatpush1.msra.mxu0 0.0
    %372 = vmatprep.subr.mxu0 0.0
    %373 = vmatpush1.msra.mxu0 0.0
    %374 = vmatprep.subr.mxu0 0.0
    %375 = vmatpush1.msra.mxu0 0.0
    %376 = vmatprep.subr.mxu0 0.0
    %377 = vmatpush1.msra.mxu0 0.0
    %378 = vmatprep.subr.mxu0 0.0
    %379 = vmatpush1.msra.mxu0 0.0
    %380 = vmatprep.subr.mxu0 0.0
    %381 = vmatpush1.msra.mxu0 0.0
    %382 = vmatprep.mubr.f32.mxu0 0.0
    %383 = vmatmul.mubr.f32.gmra.mrb[0].mxu0 %v316
    %v384 = vpop.f32.mrb[0].mxu0
    %v385 = vadd.f32 0.0, %v384
    %v386 = vpop.f32.mrb[0].mxu0
    %387 = vdwg.mxu0
    %v388 = vlog2.pop %v385
    %v389 = vmul.f32 %v388, 0.6931472
    %v390 = vadd.f32 %v311, %v389
    %s391 = sld [smem:[#allocation5]]
    %vm392 = vcmask 57344
    %v393 = vsel %vm392, %v390, 0.0
    %394 = vadd.xlane.f32.xlu0 %v393
    %v395 = vpop.xlane.xlu0 %394
    %v396 = vrot.slane %v395, 4
    %v397 = vadd.f32 %v395, %v396
    %v398 = vrot.slane %v397, 2
    %v399 = vadd.f32 %v397, %v398
    %v400 = vrot.slane %v399, 1
    %v401 = vadd.f32 %v399, %v400
    %s402 = vtos %v401
    %v403 = vsel %vm209, %v208, 0.0
    %404 = vadd.xlane.f32.xlu0 %v403
    %v405 = vpop.xlane.xlu0 %404
    %v406 = vrot.slane %v405, 4
    %v407 = vadd.f32 %v405, %v406
    %v408 = vrot.slane %v407, 2
    %v409 = vadd.f32 %v407, %v408
    %v410 = vrot.slane %v409, 1
    %v411 = vadd.f32 %v409, %v410
    %s412 = vtos %v411
    %s413 = ssub.f32 %s402, %s412
    %s414 = sadd.f32 %s391, %s413
    %s415 = scalar_lea.smem [#allocation5], 0
    %416 = sst [smem:[%s415]] %s414
    // Predicated region
    $region26: #{tpu_custom_call.1} parent=1 // pred_check
      %p417 = pneg %p44
    $region27: #{tpu_custom_call.1} parent=1 // pred_check_branch
      %419 = sbr.rel (%p417) target = $region29
    $region28: #{tpu_custom_call.1} parent=1 // pred_region
      %v420 = vld [vmem:[#allocation2] sm:$0xff]
      %v421 = vld [vmem:[#allocation3] sm:$0xff]
      %v422 = vlog2.pop %v421
      %v423 = vmul.f32 %v422, 0.6931472
      %v424 = vadd.f32 %v420, %v423
      %v425 = vld [vmem:[#allocation4] sm:$0xff]
      %v426 = vsub.f32 %v424, %v425
      %v427 = vsel %vm209, %v426, 0.0
      %428 = vadd.xlane.f32.xlu0 %v427
      %v429 = vpop.xlane.xlu0 %428
      %v430 = vrot.slane %v429, 4
      %v431 = vadd.f32 %v429, %v430
      %v432 = vrot.slane %v431, 2
      %v433 = vadd.f32 %v431, %v432
      %v434 = vrot.slane %v433, 1
      %v435 = vadd.f32 %v433, %v434
      %s436 = vtos %v435
      %s437 = sld [smem:[#allocation5]]
      %s438 = sadd.f32 %s436, %s437
      %s439 = smul.f32 %s438, 0.0625
      %s440 = scalar_lea.smem [#allocation12], 0
      %441 = sst [smem:[%s440]] %s439
    $region29: #{tpu_custom_call.1} parent=1 // pred_fallthru
      _
    // Predicated region
    $region30: #{tpu_custom_call.1} parent=1 // pred_check
      _
    $region31: #{tpu_custom_call.1} parent=1 // pred_check_branch
      %443 = sbr.rel (0) target = $region33
    $region32: #{tpu_custom_call.1} parent=1 // pred_region
      %s445 = ssub.s32 16, 16
      %446 = vsyncadd [#allocation9], %s445
      %449 = dma.smem_to_hbm [#allocation12], 16, %s3, [#allocation9]
    $region33: #{tpu_custom_call.1} parent=1 // pred_fallthru
      _
    // Predicated region
    $region34: #{tpu_custom_call.1} parent=1 // pred_check
      _
    $region35: #{tpu_custom_call.1} parent=1 // pred_check_branch
      %451 = sbr.rel (0) target = $region37
    $region36: #{tpu_custom_call.1} parent=1 // pred_region
      %452 = dma.done [#allocation9], 16
    $region37: #{tpu_custom_call.1} parent=1 // pred_fallthru
      _
    %453 = sfence
    %454 = vsyncpa [#allocation8], 1
    %455 = vsyncpa [#allocation11], 1
    %456 = vsyncpa [#allocation9], 1

// kernel: tpu_custom_call.1
$region0: #{tpu_custom_call.1}
  #allocation0 [shape = 'u32[]', space=smem, size = 0x4, offset = 0x4, fixed_abs, tag = 'smem constant byte address 0x4 - core index']
  #allocation1 [shape = 'u32[144,128]{1,0:T(1,128)}', space=vmem, size = 0x12000, scoped, tag = 'internal scratch']
  #allocation2 [shape = 'f32[8,1]{1,0:T(8,128)}', space=vmem, size = 0x1000, scoped, tag = 'scratch operand']
  #allocation3 [shape = 'f32[8,1]{1,0:T(8,128)}', space=vmem, size = 0x1000, scoped, tag = 'scratch operand']
  #allocation4 [shape = 'f32[8,1]{1,0:T(8,128)}', space=vmem, size = 0x1000, scoped, tag = 'scratch operand']
  #allocation5 [shape = 'f32[1]{0:T(128)}', space=smem, size = 0x200, scoped, tag = 'scratch operand']
  #allocation6 [shape = 'f32[1]{0:T(128)S(6)}', space=smem, size = 0x200, scoped, tag = 'scoped memory for tpu_custom_call.1']
  %s0 = inlined_call_operand.<no memory space> [shape: f32[1], index: 0, kind: input, shape index: {}]
  %s1 = inlined_call_operand.hbm [shape: f32[8,32], index: 1, kind: input, shape index: {}]
  %s2 = inlined_call_operand.hbm [shape: f32[8,32], index: 2, kind: input, shape index: {}]
  %s3 = inlined_call_operand.hbm [shape: f32[1,1], index: 3, kind: output, shape index: {}]
  %s4 = sld [smem:[#allocation0]]
  $region38: #{tpu_custom_call.1} parent=0
    _
  %s6 = ssub.s32 1, %s4
  %s7 = scalar_select 0, %s6, %s4
  %8 = sst [smem:[#allocation6]] %s0
  $region1: #{tpu_custom_call.1} parent=0
    #allocation7 [shape = 'u8[4096]{0}', space=vmem, size = 0x1000, scoped, tag = 'input window, operand 1, single buffered']
    #allocation8 [shape = 's32[1]{0}', space=sflag, size = 0x4, scoped, tag = 'scoped memory for tpu_custom_call.1']
    #allocation9 [shape = 's32[1]{0}', space=sflag, size = 0x4, scoped, tag = 'scoped memory for tpu_custom_call.1']
    #allocation10 [shape = 'u8[4096]{0}', space=vmem, size = 0x1000, scoped, tag = 'input window, operand 2, single buffered']
    #allocation11 [shape = 's32[1]{0}', space=sflag, size = 0x4, scoped, tag = 'scoped memory for tpu_custom_call.1']
    #allocation12 [shape = 'u8[512]{0}', space=smem, size = 0x200, scoped, tag = 'output window, operand 0, single buffered']
    %9 = vsyncpa [#allocation8], 0
    %10 = vsyncpa [#allocation11], 0
    %11 = vsyncpa [#allocation9], 0
    // Predicated region
    $region2: #{tpu_custom_call.1} parent=1 // pred_check
      _
    $region3: #{tpu_custom_call.1} parent=1 // pred_check_branch
      %13 = sbr.rel (0) target = $region5
    $region4: #{tpu_custom_call.1} parent=1 // pred_region
      _
    $region5: #{tpu_custom_call.1} parent=1 // pred_fallthru
      _
    // Predicated region
    $region6: #{tpu_custom_call.1} parent=1 // pred_check
      _
    $region7: #{tpu_custom_call.1} parent=1 // pred_check_branch
      %15 = sbr.rel (0) target = $region9
    $region8: #{tpu_custom_call.1} parent=1 // pred_region
      %s17 = ssub.s32 128, 128
      %18 = vsyncadd [#allocation8], %s17
      %s20 = sshll.u32 [#allocation7], 4
      %s21 = int_to_ptr.vmem [resolvable:$true] %s20
      %23 = dma.hbm_to_vmem [thread:$0]  %s1, 128, %s21, [#allocation8]
    $region9: #{tpu_custom_call.1} parent=1 // pred_fallthru
      _
    // Predicated region
    $region10: #{tpu_custom_call.1} parent=1 // pred_check
      _
    $region11: #{tpu_custom_call.1} parent=1 // pred_check_branch
      %25 = sbr.rel (0) target = $region13
    $region12: #{tpu_custom_call.1} parent=1 // pred_region
      %s27 = ssub.s32 128, 128
      %28 = vsyncadd [#allocation11], %s27
      %s30 = sshll.u32 [#allocation10], 4
      %s31 = int_to_ptr.vmem [resolvable:$true] %s30
      %33 = dma.hbm_to_vmem [thread:$0]  %s2, 128, %s31, [#allocation11]
    $region13: #{tpu_custom_call.1} parent=1 // pred_fallthru
      _
    // Predicated region
    $region14: #{tpu_custom_call.1} parent=1 // pred_check
      _
    $region15: #{tpu_custom_call.1} parent=1 // pred_check_branch
      %35 = sbr.rel (0) target = $region17
    $region16: #{tpu_custom_call.1} parent=1 // pred_region
      %36 = dma.done [#allocation8], 128
    $region17: #{tpu_custom_call.1} parent=1 // pred_fallthru
      _
    // Predicated region
    $region18: #{tpu_custom_call.1} parent=1 // pred_check
      _
    $region19: #{tpu_custom_call.1} parent=1 // pred_check_branch
      %38 = sbr.rel (0) target = $region21
    $region20: #{tpu_custom_call.1} parent=1 // pred_region
      %39 = dma.done [#allocation11], 128
    $region21: #{tpu_custom_call.1} parent=1 // pred_fallthru
      _
    %s40 = sld [smem:[#allocation6]]
    %v41 = vstv %s40
    %v42 = vrcp.pop %v41
    %s43 = vtos %v42
    %p44 = scmp.eq.s32.totalorder 0, 0
    // Predicated region
    $region22: #{tpu_custom_call.1} parent=1 // pred_check
      %p45 = pneg %p44
    $region23: #{tpu_custom_call.1} parent=1 // pred_check_branch
      %47 = sbr.rel (%p45) target = $region25
    $region24: #{tpu_custom_call.1} parent=1 // pred_region
      %vm48 = vcmask 7168
      %49 = vst.msk [vmem:[#allocation2] sm:$0xff] %vm48, -inf
      %50 = vst.msk [vmem:[#allocation3] sm:$0xff] %vm48, 0.0
      %s51 = scalar_lea.smem [#allocation5], 0
      %52 = sst [smem:[%s51]] 0.0
    $region25: #{tpu_custom_call.1} parent=1 // pred_fallthru
      _
    %v53 = vld [vmem:[#allocation7] sm:$0xff]
    %v54 = vld [vmem:[#allocation10] sm:$0xff]
    %vm55 = vcmask 261120
    %v57 = vsel %vm55, %v53, 0
    %v60 = vsel %vm55, %v54, 0
    %62 = vmatprep.subr.mxu0 0.0
    %63 = vmatpush1.xpose.msra.mxu0 %v60
    %64 = vmatprep.subr.mxu0 0.0
    %65 = vmatpush1.xpose.msra.mxu0 0.0
    %66 = vmatprep.subr.mxu0 0.0
    %67 = vmatpush1.xpose.msra.mxu0 0.0
    %68 = vmatprep.subr.mxu0 0.0
    %69 = vmatpush1.xpose.msra.mxu0 0.0
    %70 = vmatprep.subr.mxu0 0.0
    %71 = vmatpush1.xpose.msra.mxu0 0.0
    %72 = vmatprep.subr.mxu0 0.0
    %73 = vmatpush1.xpose.msra.mxu0 0.0
    %74 = vmatprep.subr.mxu0 0.0
    %75 = vmatpush1.xpose.msra.mxu0 0.0
    %76 = vmatprep.subr.mxu0 0.0
    %77 = vmatpush1.xpose.msra.mxu0 0.0
    %78 = vmatprep.subr.mxu0 0.0
    %79 = vmatpush1.xpose.msra.mxu0 0.0
    %80 = vmatprep.subr.mxu0 0.0
    %81 = vmatpush1.xpose.msra.mxu0 0.0
    %82 = vmatprep.subr.mxu0 0.0
    %83 = vmatpush1.xpose.msra.mxu0 0.0
    %84 = vmatprep.subr.mxu0 0.0
    %85 = vmatpush1.xpose.msra.mxu0 0.0
    %86 = vmatprep.subr.mxu0 0.0
    %87 = vmatpush1.xpose.msra.mxu0 0.0
    %88 = vmatprep.subr.mxu0 0.0
    %89 = vmatpush1.xpose.msra.mxu0 0.0
    %90 = vmatprep.subr.mxu0 0.0
    %91 = vmatpush1.xpose.msra.mxu0 0.0
    %92 = vmatprep.subr.mxu0 0.0
    %93 = vmatpush1.xpose.msra.mxu0 0.0
    %94 = vmatprep.subr.mxu0 0.0
    %95 = vmatpush1.xpose.msra.mxu0 0.0
    %96 = vmatprep.subr.mxu0 0.0
    %97 = vmatpush1.xpose.msra.mxu0 0.0
    %98 = vmatprep.subr.mxu0 0.0
    %99 = vmatpush1.xpose.msra.mxu0 0.0
    %100 = vmatprep.subr.mxu0 0.0
    %101 = vmatpush1.xpose.msra.mxu0 0.0
    %102 = vmatprep.subr.mxu0 0.0
    %103 = vmatpush1.xpose.msra.mxu0 0.0
    %104 = vmatprep.subr.mxu0 0.0
    %105 = vmatpush1.xpose.msra.mxu0 0.0
    %106 = vmatprep.subr.mxu0 0.0
    %107 = vmatpush1.xpose.msra.mxu0 0.0
    %108 = vmatprep.subr.mxu0 0.0
    %109 = vmatpush1.xpose.msra.mxu0 0.0
    %110 = vmatprep.subr.mxu0 0.0
    %111 = vmatpush1.xpose.msra.mxu0 0.0
    %112 = vmatprep.subr.mxu0 0.0
    %113 = vmatpush1.xpose.msra.mxu0 0.0
    %114 = vmatprep.subr.mxu0 0.0
    %115 = vmatpush1.xpose.msra.mxu0 0.0
    %116 = vmatprep.subr.mxu0 0.0
    %117 = vmatpush1.xpose.msra.mxu0 0.0
    %118 = vmatprep.subr.mxu0 0.0
    %119 = vmatpush1.xpose.msra.mxu0 0.0
    %120 = vmatprep.subr.mxu0 0.0
    %121 = vmatpush1.xpose.msra.mxu0 0.0
    %122 = vmatprep.subr.mxu0 0.0
    %123 = vmatpush1.xpose.msra.mxu0 0.0
    %124 = vmatprep.subr.mxu0 0.0
    %125 = vmatpush1.xpose.msra.mxu0 0.0
    %126 = vmatprep.mubr.f32.mxu0 0.0
    %127 = vmatmul.mubr.f32.gmra.mrb[0].mxu0 %v57
    %v128 = vpop.f32.mrb[0].mxu0
    %v129 = vadd.f32 0.0, %v128
    %v130 = vpop.f32.mrb[0].mxu0
    %131 = vdwg.mxu0
    %v132 = vstv %s43
    %v133 = vmul.f32 %v129, %v132
    %v134 = vmul.f32 %v53, %v54
    %v136 = vsel %vm55, %v134, 0
    %138 = vmatprep.subr.mxu0 0.0
    %139 = vmatpush1.msra.mxu0 1.0
    %140 = vmatprep.subr.mxu0 0.0
    %141 = vmatpush1.msra.mxu0 1.0
    %142 = vmatprep.subr.mxu0 0.0
    %143 = vmatpush1.msra.mxu0 1.0
    %144 = vmatprep.subr.mxu0 0.0
    %145 = vmatpush1.msra.mxu0 1.0
    %146 = vmatprep.subr.mxu0 0.0
    %147 = vmatpush1.msra.mxu0 0.0
    %148 = vmatprep.subr.mxu0 0.0
    %149 = vmatpush1.msra.mxu0 0.0
    %150 = vmatprep.subr.mxu0 0.0
    %151 = vmatpush1.msra.mxu0 0.0
    %152 = vmatprep.subr.mxu0 0.0
    %153 = vmatpush1.msra.mxu0 0.0
    %154 = vmatprep.subr.mxu0 0.0
    %155 = vmatpush1.msra.mxu0 0.0
    %156 = vmatprep.subr.mxu0 0.0
    %157 = vmatpush1.msra.mxu0 0.0
    %158 = vmatprep.subr.mxu0 0.0
    %159 = vmatpush1.msra.mxu0 0.0
    %160 = vmatprep.subr.mxu0 0.0
    %161 = vmatpush1.msra.mxu0 0.0
    %162 = vmatprep.subr.mxu0 0.0
    %163 = vmatpush1.msra.mxu0 0.0
    %164 = vmatprep.subr.mxu0 0.0
    %165 = vmatpush1.msra.mxu0 0.0
    %166 = vmatprep.subr.mxu0 0.0
    %167 = vmatpush1.msra.mxu0 0.0
    %168 = vmatprep.subr.mxu0 0.0
    %169 = vmatpush1.msra.mxu0 0.0
    %170 = vmatprep.subr.mxu0 0.0
    %171 = vmatpush1.msra.mxu0 0.0
    %172 = vmatprep.subr.mxu0 0.0
    %173 = vmatpush1.msra.mxu0 0.0
    %174 = vmatprep.subr.mxu0 0.0
    %175 = vmatpush1.msra.mxu0 0.0
    %176 = vmatprep.subr.mxu0 0.0
    %177 = vmatpush1.msra.mxu0 0.0
    %178 = vmatprep.subr.mxu0 0.0
    %179 = vmatpush1.msra.mxu0 0.0
    %180 = vmatprep.subr.mxu0 0.0
    %181 = vmatpush1.msra.mxu0 0.0
    %182 = vmatprep.subr.mxu0 0.0
    %183 = vmatpush1.msra.mxu0 0.0
    %184 = vmatprep.subr.mxu0 0.0
    %185 = vmatpush1.msra.mxu0 0.0
    %186 = vmatprep.subr.mxu0 0.0
    %187 = vmatpush1.msra.mxu0 0.0
    %188 = vmatprep.subr.mxu0 0.0
    %189 = vmatpush1.msra.mxu0 0.0
    %190 = vmatprep.subr.mxu0 0.0
    %191 = vmatpush1.msra.mxu0 0.0
    %192 = vmatprep.subr.mxu0 0.0
    %193 = vmatpush1.msra.mxu0 0.0
    %194 = vmatprep.subr.mxu0 0.0
    %195 = vmatpush1.msra.mxu0 0.0
    %196 = vmatprep.subr.mxu0 0.0
    %197 = vmatpush1.msra.mxu0 0.0
    %198 = vmatprep.subr.mxu0 0.0
    %199 = vmatpush1.msra.mxu0 0.0
    %200 = vmatprep.subr.mxu0 0.0
    %201 = vmatpush1.msra.mxu0 0.0
    %202 = vmatprep.mubr.f32.mxu0 0.0
    %203 = vmatmul.mubr.f32.gmra.mrb[0].mxu0 %v136
    %v204 = vpop.f32.mrb[0].mxu0
    %v205 = vadd.f32 0.0, %v204
    %v206 = vpop.f32.mrb[0].mxu0
    %207 = vdwg.mxu0
    %v208 = vmul.f32 %v205, %v132
    %vm209 = vcmask 7168
    %210 = vst.msk [vmem:[#allocation4] sm:$0xff] %vm209, %v208
    %v211 = vld [vmem:[#allocation2] sm:$0xff]
    %vm212 = vcmask 64512
    %v213 = vsel %vm212, %v133, -inf
    %214 = vmax.xlane.f32.xlu0 %v213
    %v215 = vpop.xlane.xlu0 %214
    %v216 = vmax.f32 %v211, %v215
    %218 = vset.pattern.permute.xlu0 0
    %219 = vperm.xlu0 %218, %v216
    %v220 = vpop.permute.xlu0 %219
    %v222 = vsub.f32 %v133, %v220
    %v223 = vmul.f32 %v222, 1.442695
    %v224 = vpow.pop %v223
    %v226 = vsel %vm212, %v224, 0
    %228 = vmatprep.subr.mxu0 0.0
    %229 = vmatpush1.msra.mxu0 1.0
    %230 = vmatprep.subr.mxu0 0.0
    %231 = vmatpush1.msra.mxu0 0.0
    %232 = vmatprep.subr.mxu0 0.0
    %233 = vmatpush1.msra.mxu0 0.0
    %234 = vmatprep.subr.mxu0 0.0
    %235 = vmatpush1.msra.mxu0 0.0
    %236 = vmatprep.subr.mxu0 0.0
    %237 = vmatpush1.msra.mxu0 0.0
    %238 = vmatprep.subr.mxu0 0.0
    %239 = vmatpush1.msra.mxu0 0.0
    %240 = vmatprep.subr.mxu0 0.0
    %241 = vmatpush1.msra.mxu0 0.0
    %242 = vmatprep.subr.mxu0 0.0
    %243 = vmatpush1.msra.mxu0 0.0
    %244 = vmatprep.subr.mxu0 0.0
    %245 = vmatpush1.msra.mxu0 0.0
    %246 = vmatprep.subr.mxu0 0.0
    %247 = vmatpush1.msra.mxu0 0.0
    %248 = vmatprep.subr.mxu0 0.0
    %249 = vmatpush1.msra.mxu0 0.0
    %250 = vmatprep.subr.mxu0 0.0
    %251 = vmatpush1.msra.mxu0 0.0
    %252 = vmatprep.subr.mxu0 0.0
    %253 = vmatpush1.msra.mxu0 0.0
    %254 = vmatprep.subr.mxu0 0.0
    %255 = vmatpush1.msra.mxu0 0.0
    %256 = vmatprep.subr.mxu0 0.0
    %257 = vmatpush1.msra.mxu0 0.0
    %258 = vmatprep.subr.mxu0 0.0
    %259 = vmatpush1.msra.mxu0 0.0
    %260 = vmatprep.subr.mxu0 0.0
    %261 = vmatpush1.msra.mxu0 0.0
    %262 = vmatprep.subr.mxu0 0.0
    %263 = vmatpush1.msra.mxu0 0.0
    %264 = vmatprep.subr.mxu0 0.0
    %265 = vmatpush1.msra.mxu0 0.0
    %266 = vmatprep.subr.mxu0 0.0
    %267 = vmatpush1.msra.mxu0 0.0
    %268 = vmatprep.subr.mxu0 0.0
    %269 = vmatpush1.msra.mxu0 0.0
    %270 = vmatprep.subr.mxu0 0.0
    %271 = vmatpush1.msra.mxu0 0.0
    %272 = vmatprep.subr.mxu0 0.0
    %273 = vmatpush1.msra.mxu0 0.0
    %274 = vmatprep.subr.mxu0 0.0
    %275 = vmatpush1.msra.mxu0 0.0
    %276 = vmatprep.subr.mxu0 0.0
    %277 = vmatpush1.msra.mxu0 0.0
    %278 = vmatprep.subr.mxu0 0.0
    %279 = vmatpush1.msra.mxu0 0.0
    %280 = vmatprep.subr.mxu0 0.0
    %281 = vmatpush1.msra.mxu0 0.0
    %282 = vmatprep.subr.mxu0 0.0
    %283 = vmatpush1.msra.mxu0 0.0
    %284 = vmatprep.subr.mxu0 0.0
    %285 = vmatpush1.msra.mxu0 0.0
    %286 = vmatprep.subr.mxu0 0.0
    %287 = vmatpush1.msra.mxu0 0.0
    %288 = vmatprep.subr.mxu0 0.0
    %289 = vmatpush1.msra.mxu0 0.0
    %290 = vmatprep.subr.mxu0 0.0
    %291 = vmatpush1.msra.mxu0 0.0
    %292 = vmatprep.mubr.f32.mxu0 0.0
    %293 = vmatmul.mubr.f32.gmra.mrb[0].mxu0 %v226
    %v294 = vpop.f32.mrb[0].mxu0
    %v295 = vadd.f32 0.0, %v294
    %v296 = vpop.f32.mrb[0].mxu0
    %297 = vdwg.mxu0
    %v298 = vld [vmem:[#allocation3] sm:$0xff]
    %v299 = vsub.f32 %v211, %v216
    %v300 = vmul.f32 %v299, 1.442695
    %v301 = vpow.pop %v300
    %v302 = vmul.f32 %v298, %v301
    %v303 = vadd.f32 %v302, %v295
    %304 = vst.msk [vmem:[#allocation3] sm:$0xff] %vm209, %v303
    %305 = vst.msk [vmem:[#allocation2] sm:$0xff] %vm209, %v216
    %v306 = vrot.slane %v213, 4
    %v307 = vmax.f32 %v213, %v306
    %v308 = vrot.slane %v307, 2
    %v309 = vmax.f32 %v307, %v308
    %v310 = vrot.slane %v309, 1
    %v311 = vmax.f32 %v309, %v310
    %v312 = vsub.f32 %v133, %v311
    %v313 = vmul.f32 %v312, 1.442695
    %v314 = vpow.pop %v313
    %v316 = vsel %vm212, 1.0, 0
    %318 = vmatprep.subr.mxu0 0.0
    %319 = vmatpush1.msra.mxu0 %v314
    %320 = vmatprep.subr.mxu0 0.0
    %321 = vmatpush1.msra.mxu0 0.0
    %322 = vmatprep.subr.mxu0 0.0
    %323 = vmatpush1.msra.mxu0 0.0
    %324 = vmatprep.subr.mxu0 0.0
    %325 = vmatpush1.msra.mxu0 0.0
    %326 = vmatprep.subr.mxu0 0.0
    %327 = vmatpush1.msra.mxu0 0.0
    %328 = vmatprep.subr.mxu0 0.0
    %329 = vmatpush1.msra.mxu0 0.0
    %330 = vmatprep.subr.mxu0 0.0
    %331 = vmatpush1.msra.mxu0 0.0
    %332 = vmatprep.subr.mxu0 0.0
    %333 = vmatpush1.msra.mxu0 0.0
    %334 = vmatprep.subr.mxu0 0.0
    %335 = vmatpush1.msra.mxu0 0.0
    %336 = vmatprep.subr.mxu0 0.0
    %337 = vmatpush1.msra.mxu0 0.0
    %338 = vmatprep.subr.mxu0 0.0
    %339 = vmatpush1.msra.mxu0 0.0
    %340 = vmatprep.subr.mxu0 0.0
    %341 = vmatpush1.msra.mxu0 0.0
    %342 = vmatprep.subr.mxu0 0.0
    %343 = vmatpush1.msra.mxu0 0.0
    %344 = vmatprep.subr.mxu0 0.0
    %345 = vmatpush1.msra.mxu0 0.0
    %346 = vmatprep.subr.mxu0 0.0
    %347 = vmatpush1.msra.mxu0 0.0
    %348 = vmatprep.subr.mxu0 0.0
    %349 = vmatpush1.msra.mxu0 0.0
    %350 = vmatprep.subr.mxu0 0.0
    %351 = vmatpush1.msra.mxu0 0.0
    %352 = vmatprep.subr.mxu0 0.0
    %353 = vmatpush1.msra.mxu0 0.0
    %354 = vmatprep.subr.mxu0 0.0
    %355 = vmatpush1.msra.mxu0 0.0
    %356 = vmatprep.subr.mxu0 0.0
    %357 = vmatpush1.msra.mxu0 0.0
    %358 = vmatprep.subr.mxu0 0.0
    %359 = vmatpush1.msra.mxu0 0.0
    %360 = vmatprep.subr.mxu0 0.0
    %361 = vmatpush1.msra.mxu0 0.0
    %362 = vmatprep.subr.mxu0 0.0
    %363 = vmatpush1.msra.mxu0 0.0
    %364 = vmatprep.subr.mxu0 0.0
    %365 = vmatpush1.msra.mxu0 0.0
    %366 = vmatprep.subr.mxu0 0.0
    %367 = vmatpush1.msra.mxu0 0.0
    %368 = vmatprep.subr.mxu0 0.0
    %369 = vmatpush1.msra.mxu0 0.0
    %370 = vmatprep.subr.mxu0 0.0
    %371 = vmatpush1.msra.mxu0 0.0
    %372 = vmatprep.subr.mxu0 0.0
    %373 = vmatpush1.msra.mxu0 0.0
    %374 = vmatprep.subr.mxu0 0.0
    %375 = vmatpush1.msra.mxu0 0.0
    %376 = vmatprep.subr.mxu0 0.0
    %377 = vmatpush1.msra.mxu0 0.0
    %378 = vmatprep.subr.mxu0 0.0
    %379 = vmatpush1.msra.mxu0 0.0
    %380 = vmatprep.subr.mxu0 0.0
    %381 = vmatpush1.msra.mxu0 0.0
    %382 = vmatprep.mubr.f32.mxu0 0.0
    %383 = vmatmul.mubr.f32.gmra.mrb[0].mxu0 %v316
    %v384 = vpop.f32.mrb[0].mxu0
    %v385 = vadd.f32 0.0, %v384
    %v386 = vpop.f32.mrb[0].mxu0
    %387 = vdwg.mxu0
    %v388 = vlog2.pop %v385
    %v389 = vmul.f32 %v388, 0.6931472
    %v390 = vadd.f32 %v311, %v389
    %s391 = sld [smem:[#allocation5]]
    %vm392 = vcmask 57344
    %v393 = vsel %vm392, %v390, 0.0
    %394 = vadd.xlane.f32.xlu0 %v393
    %v395 = vpop.xlane.xlu0 %394
    %v396 = vrot.slane %v395, 4
    %v397 = vadd.f32 %v395, %v396
    %v398 = vrot.slane %v397, 2
    %v399 = vadd.f32 %v397, %v398
    %v400 = vrot.slane %v399, 1
    %v401 = vadd.f32 %v399, %v400
    %s402 = vtos %v401
    %v403 = vsel %vm209, %v208, 0.0
    %404 = vadd.xlane.f32.xlu0 %v403
    %v405 = vpop.xlane.xlu0 %404
    %v406 = vrot.slane %v405, 4
    %v407 = vadd.f32 %v405, %v406
    %v408 = vrot.slane %v407, 2
    %v409 = vadd.f32 %v407, %v408
    %v410 = vrot.slane %v409, 1
    %v411 = vadd.f32 %v409, %v410
    %s412 = vtos %v411
    %s413 = ssub.f32 %s402, %s412
    %s414 = sadd.f32 %s391, %s413
    %s415 = scalar_lea.smem [#allocation5], 0
    %416 = sst [smem:[%s415]] %s414
    // Predicated region
    $region26: #{tpu_custom_call.1} parent=1 // pred_check
      %p417 = pneg %p44
    $region27: #{tpu_custom_call.1} parent=1 // pred_check_branch
      %419 = sbr.rel (%p417) target = $region29
    $region28: #{tpu_custom_call.1} parent=1 // pred_region
      %v420 = vld [vmem:[#allocation2] sm:$0xff]
      %v421 = vld [vmem:[#allocation3] sm:$0xff]
      %v422 = vlog2.pop %v421
      %v423 = vmul.f32 %v422, 0.6931472
      %v424 = vadd.f32 %v420, %v423
      %v425 = vld [vmem:[#allocation4] sm:$0xff]
      %v426 = vsub.f32 %v424, %v425
      %v427 = vsel %vm209, %v426, 0.0
      %428 = vadd.xlane.f32.xlu0 %v427
      %v429 = vpop.xlane.xlu0 %428
      %v430 = vrot.slane %v429, 4
      %v431 = vadd.f32 %v429, %v430
      %v432 = vrot.slane %v431, 2
      %v433 = vadd.f32 %v431, %v432
      %v434 = vrot.slane %v433, 1
      %v435 = vadd.f32 %v433, %v434
      %s436 = vtos %v435
      %s437 = sld [smem:[#allocation5]]
      %s438 = sadd.f32 %s436, %s437
      %s439 = smul.f32 %s438, 0.0625
      %s440 = scalar_lea.smem [#allocation12], 0
      %441 = sst [smem:[%s440]] %s439
    $region29: #{tpu_custom_call.1} parent=1 // pred_fallthru
      _
    // Predicated region
    $region30: #{tpu_custom_call.1} parent=1 // pred_check
      _
    $region31: #{tpu_custom_call.1} parent=1 // pred_check_branch
      %443 = sbr.rel (0) target = $region33
    $region32: #{tpu_custom_call.1} parent=1 // pred_region
      %s445 = ssub.s32 16, 16
      %446 = vsyncadd [#allocation9], %s445
      %449 = dma.smem_to_hbm [#allocation12], 16, %s3, [#allocation9]
    $region33: #{tpu_custom_call.1} parent=1 // pred_fallthru
      _
    // Predicated region
    $region34: #{tpu_custom_call.1} parent=1 // pred_check
      _
    $region35: #{tpu_custom_call.1} parent=1 // pred_check_branch
      %451 = sbr.rel (0) target = $region37
    $region36: #{tpu_custom_call.1} parent=1 // pred_region
      %452 = dma.done [#allocation9], 16
    $region37: #{tpu_custom_call.1} parent=1 // pred_fallthru
      _
    %453 = sfence
    %454 = vsyncpa [#allocation8], 1
    %455 = vsyncpa [#allocation11], 1
    %456 = vsyncpa [#allocation9], 1

</llo_original>
